<compile_context>
chip_gen: v7x
topology: tpu7x:2x2x1
jax: 0.10.0
libtpu: 0.0.40
codegen_flags: <defaults>
</compile_context>

<pallas_src>
import jax
import jax.numpy as jnp
from jax.experimental import pallas as pl
from jax.experimental.pallas import tpu as pltpu


def _cdiv(a, b):
    return (a + b - 1) // b


def _round_up(n, m):
    return _cdiv(n, m) * m


def _make_kernel(freqs, num_funcs):
    nf2 = 2 * num_funcs

    def kernel(x_ref, o_ref):
        # x_ref: (BR, C) f32   — BR % 8 == 0, C % 128 == 0 -> full (8,128) vregs.
        # o_ref: (1 + 4*num_funcs, BR, C) f32 — feature-major; one full-slab
        #        store per output feature row (no masked/partial stores).
        xv = x_ref[...]                                  # (BR, C)
        o_ref[0, :, :] = xv                              # row 0: x itself
        # Unrolled at trace time; freqs are compile-time Python floats, so each
        # multiply is an immediate-scalar VPU op and each sin/cos hits the EUP.
        for k, f in enumerate(freqs):
            xf = xv * f
            o_ref[1 + k, :, :] = jnp.sin(xf)             # rows 1 .. 2*nf
            o_ref[1 + nf2 + k, :, :] = jnp.cos(xf)       # rows 1+2*nf .. 4*nf

    return kernel


def angular_encoding(x, num_funcs=3, target_block=131072, lane_width=128):
    """AngularEncoding forward, feature-major output.

    x: (E,) float -> (1 + 4*num_funcs, E) float32 where
      row 0            : x
      rows 1 .. 2n     : sin(x * freq_bands)
      rows 1+2n .. 4n  : cos(x * freq_bands)
    The PyTorch module layout (E, 1+4*num_funcs) is simply the transpose of
    this; it is kept feature-major here to avoid a second HBM pass (fold any
    transpose into the downstream consumer).
    """
    E = x.shape[0]
    out_dim = 1 + 4 * num_funcs
    # register_buffer('freq_bands', [1..n, 1/1, .., 1/n]) — baked as constants.
    freqs = [float(i + 1) for i in range(num_funcs)] + \
            [1.0 / float(i + 1) for i in range(num_funcs)]

    C = lane_width                  # lane axis width (multiple of 128)
    min_tile = 8 * C                # smallest full-vreg tile (8 sublanes x C lanes)

    # Tile count from the element count (bounds padding waste); guarantee >= 2
    # tiles when E allows so v7x can shard the parallel axis over both TCs.
    n_tiles = max(_cdiv(E, target_block), 1)
    if n_tiles == 1 and E > min_tile:
        n_tiles = 2
    tile_elems = _round_up(_cdiv(E, n_tiles), min_tile)
    E_pad = n_tiles * tile_elems
    BR = tile_elems // C            # block rows per tile (multiple of 8)
    R = E_pad // C                  # total rows of the reshaped x

    # Single cheap pad, then a free contiguous reshape to the lane-dense slab.
    # TODO(synk): the pad costs ~8E extra HBM bytes; a ragged tail tile with
    # masked tail stores could remove it.
    x2d = jnp.pad(x.astype(jnp.float32), (0, E_pad - E)).reshape(R, C)

    cost = pl.CostEstimate(
        flops=2 * num_funcs * E_pad,               # the x*freq multiplies
        transcendentals=4 * num_funcs * E_pad,     # 2n sin + 2n cos per element
        bytes_accessed=4 * E_pad * (1 + out_dim),  # read x + write code
    )

    # in-tile + out-tile bytes, double-buffered, plus margin; capped well under
    # v7x's 64 MiB physical VMEM.
    tile_bytes = 4 * tile_elems * (1 + out_dim)
    vmem_limit = int(min(max(2 * tile_bytes + (8 << 20), 32 << 20), 56 << 20))

    out_3d = pl.pallas_call(
        _make_kernel(freqs, num_funcs),
        out_shape=jax.ShapeDtypeStruct((out_dim, R, C), jnp.float32),
        grid_spec=pltpu.PrefetchScalarGridSpec(
            num_scalar_prefetch=0,
            grid=(n_tiles,),
            in_specs=[pl.BlockSpec((BR, C), lambda i: (i, 0))],
            out_specs=pl.BlockSpec((out_dim, BR, C), lambda i: (0, i, 0)),
        ),
        compiler_params=pltpu.CompilerParams(
            dimension_semantics=("parallel",),     # tiles independent -> megacore
            vmem_limit_bytes=vmem_limit,
        ),
        cost_estimate=cost,
    )(x2d)

    # (out_dim, R, C) -> (out_dim, E_pad) is a contiguous (free) reshape; slice
    # off the padding.  No transpose back to (E, out_dim).
    return out_3d.reshape(out_dim, E_pad)[:, :E]


def _reference(x, num_funcs=3):
    """Pure-JAX port of the PyTorch forward (module layout (E, 1+4n))."""
    freq_bands = jnp.asarray(
        [float(i + 1) for i in range(num_funcs)]
        + [1.0 / float(i + 1) for i in range(num_funcs)],
        dtype=jnp.float32,
    )
    xe = x[:, None].astype(jnp.float32)
    return jnp.concatenate([xe, jnp.sin(xe * freq_bands), jnp.cos(xe * freq_bands)], axis=-1)


if __name__ == "__main__":
    key = jax.random.PRNGKey(0)
    num_funcs = 3
    out_dim = 1 + 4 * num_funcs

    # E=200: not a multiple of 128 (exercises padding, single tile).
    # E=9000: exercises the multi-tile (2-tile) path.
    for E in (200, 9000):
        key, sub = jax.random.split(key)
        x = jax.random.normal(sub, (E,), dtype=jnp.float32) * 3.14159

        out_fm = jax.block_until_ready(angular_encoding(x, num_funcs=num_funcs))
        ref = _reference(x, num_funcs=num_funcs)          # (E, 13), PyTorch layout

        assert out_fm.shape == (out_dim, E), out_fm.shape
        err = float(jnp.max(jnp.abs(out_fm - ref.T)))
        assert jnp.allclose(out_fm, ref.T, atol=1e-5, rtol=1e-5), err
        # The PyTorch module layout is exactly the transpose.
        assert jnp.allclose(out_fm.T, ref, atol=1e-5, rtol=1e-5), err

    print("KERNEL_OK")
</pallas_src>

<mosaic_0001>
module attributes {stable_mosaic.version = 11 : i64} {
  func.func @kernel(%arg0: i32, %arg1: memref<8x128xf32, #tpu.memory_space<vmem>>, %arg2: memref<13x8x128xf32, #tpu.memory_space<vmem>>) attributes {dimension_semantics = [#tpu.dimension_semantics<parallel>], iteration_bounds = array<i64: 1>, scalar_prefetch = 0 : i64, scratch_operands = 0 : i64, tpu.core_type = #tpu.core_type<tc>, window_params = [{transform_indices = @transform_0, window_bounds = array<i64: 8, 128>}, {transform_indices = @transform_1, window_bounds = array<i64: 13, 8, 128>}]} {
    %c0 = arith.constant 0 : index
    %c0_0 = arith.constant 0 : index
    %0 = vector.load %arg1[%c0, %c0_0] : memref<8x128xf32, #tpu.memory_space<vmem>>, vector<8x128xf32>
    %c0_1 = arith.constant 0 : index
    %c0_2 = arith.constant 0 : index
    %c0_3 = arith.constant 0 : index
    %1 = vector.load %arg2[%c0_1, %c0_2, %c0_3] : memref<13x8x128xf32, #tpu.memory_space<vmem>>, vector<1x8x128xf32>
    %2 = vector.shape_cast %1 : vector<1x8x128xf32> to vector<8x128xf32>
    %3 = vector.shape_cast %0 : vector<8x128xf32> to vector<1x8x128xf32>
    tpu.vector_store %arg2[%c0_1, %c0_2, %c0_3], %3 {strides = array<i32>} : memref<13x8x128xf32, #tpu.memory_space<vmem>>, vector<1x8x128xf32>,
    %cst = arith.constant 1.000000e+00 : f32
    %4 = vector.broadcast %cst : f32 to vector<8x128xf32>
    %5 = arith.mulf %0, %4 : vector<8x128xf32>
    %6 = math.sin %5 : vector<8x128xf32>
    %c1 = arith.constant 1 : index
    %c0_4 = arith.constant 0 : index
    %c0_5 = arith.constant 0 : index
    %7 = vector.load %arg2[%c1, %c0_4, %c0_5] : memref<13x8x128xf32, #tpu.memory_space<vmem>>, vector<1x8x128xf32>
    %8 = vector.shape_cast %7 : vector<1x8x128xf32> to vector<8x128xf32>
    %9 = vector.shape_cast %6 : vector<8x128xf32> to vector<1x8x128xf32>
    tpu.vector_store %arg2[%c1, %c0_4, %c0_5], %9 {strides = array<i32>} : memref<13x8x128xf32, #tpu.memory_space<vmem>>, vector<1x8x128xf32>,
    %10 = math.cos %5 : vector<8x128xf32>
    %c7 = arith.constant 7 : index
    %c0_6 = arith.constant 0 : index
    %c0_7 = arith.constant 0 : index
    %11 = vector.load %arg2[%c7, %c0_6, %c0_7] : memref<13x8x128xf32, #tpu.memory_space<vmem>>, vector<1x8x128xf32>
    %12 = vector.shape_cast %11 : vector<1x8x128xf32> to vector<8x128xf32>
    %13 = vector.shape_cast %10 : vector<8x128xf32> to vector<1x8x128xf32>
    tpu.vector_store %arg2[%c7, %c0_6, %c0_7], %13 {strides = array<i32>} : memref<13x8x128xf32, #tpu.memory_space<vmem>>, vector<1x8x128xf32>,
    %cst_8 = arith.constant 2.000000e+00 : f32
    %14 = vector.broadcast %cst_8 : f32 to vector<8x128xf32>
    %15 = arith.mulf %0, %14 : vector<8x128xf32>
    %16 = math.sin %15 : vector<8x128xf32>
    %c2 = arith.constant 2 : index
    %c0_9 = arith.constant 0 : index
    %c0_10 = arith.constant 0 : index
    %17 = vector.load %arg2[%c2, %c0_9, %c0_10] : memref<13x8x128xf32, #tpu.memory_space<vmem>>, vector<1x8x128xf32>
    %18 = vector.shape_cast %17 : vector<1x8x128xf32> to vector<8x128xf32>
    %19 = vector.shape_cast %16 : vector<8x128xf32> to vector<1x8x128xf32>
    tpu.vector_store %arg2[%c2, %c0_9, %c0_10], %19 {strides = array<i32>} : memref<13x8x128xf32, #tpu.memory_space<vmem>>, vector<1x8x128xf32>,
    %20 = math.cos %15 : vector<8x128xf32>
    %c8 = arith.constant 8 : index
    %c0_11 = arith.constant 0 : index
    %c0_12 = arith.constant 0 : index
    %21 = vector.load %arg2[%c8, %c0_11, %c0_12] : memref<13x8x128xf32, #tpu.memory_space<vmem>>, vector<1x8x128xf32>
    %22 = vector.shape_cast %21 : vector<1x8x128xf32> to vector<8x128xf32>
    %23 = vector.shape_cast %20 : vector<8x128xf32> to vector<1x8x128xf32>
    tpu.vector_store %arg2[%c8, %c0_11, %c0_12], %23 {strides = array<i32>} : memref<13x8x128xf32, #tpu.memory_space<vmem>>, vector<1x8x128xf32>,
    %cst_13 = arith.constant 3.000000e+00 : f32
    %24 = vector.broadcast %cst_13 : f32 to vector<8x128xf32>
    %25 = arith.mulf %0, %24 : vector<8x128xf32>
    %26 = math.sin %25 : vector<8x128xf32>
    %c3 = arith.constant 3 : index
    %c0_14 = arith.constant 0 : index
    %c0_15 = arith.constant 0 : index
    %27 = vector.load %arg2[%c3, %c0_14, %c0_15] : memref<13x8x128xf32, #tpu.memory_space<vmem>>, vector<1x8x128xf32>
    %28 = vector.shape_cast %27 : vector<1x8x128xf32> to vector<8x128xf32>
    %29 = vector.shape_cast %26 : vector<8x128xf32> to vector<1x8x128xf32>
    tpu.vector_store %arg2[%c3, %c0_14, %c0_15], %29 {strides = array<i32>} : memref<13x8x128xf32, #tpu.memory_space<vmem>>, vector<1x8x128xf32>,
    %30 = math.cos %25 : vector<8x128xf32>
    %c9 = arith.constant 9 : index
    %c0_16 = arith.constant 0 : index
    %c0_17 = arith.constant 0 : index
    %31 = vector.load %arg2[%c9, %c0_16, %c0_17] : memref<13x8x128xf32, #tpu.memory_space<vmem>>, vector<1x8x128xf32>
    %32 = vector.shape_cast %31 : vector<1x8x128xf32> to vector<8x128xf32>
    %33 = vector.shape_cast %30 : vector<8x128xf32> to vector<1x8x128xf32>
    tpu.vector_store %arg2[%c9, %c0_16, %c0_17], %33 {strides = array<i32>} : memref<13x8x128xf32, #tpu.memory_space<vmem>>, vector<1x8x128xf32>,
    %cst_18 = arith.constant 1.000000e+00 : f32
    %34 = vector.broadcast %cst_18 : f32 to vector<8x128xf32>
    %35 = arith.mulf %0, %34 : vector<8x128xf32>
    %36 = math.sin %35 : vector<8x128xf32>
    %c4 = arith.constant 4 : index
    %c0_19 = arith.constant 0 : index
    %c0_20 = arith.constant 0 : index
    %37 = vector.load %arg2[%c4, %c0_19, %c0_20] : memref<13x8x128xf32, #tpu.memory_space<vmem>>, vector<1x8x128xf32>
    %38 = vector.shape_cast %37 : vector<1x8x128xf32> to vector<8x128xf32>
    %39 = vector.shape_cast %36 : vector<8x128xf32> to vector<1x8x128xf32>
    tpu.vector_store %arg2[%c4, %c0_19, %c0_20], %39 {strides = array<i32>} : memref<13x8x128xf32, #tpu.memory_space<vmem>>, vector<1x8x128xf32>,
    %40 = math.cos %35 : vector<8x128xf32>
    %c10 = arith.constant 10 : index
    %c0_21 = arith.constant 0 : index
    %c0_22 = arith.constant 0 : index
    %41 = vector.load %arg2[%c10, %c0_21, %c0_22] : memref<13x8x128xf32, #tpu.memory_space<vmem>>, vector<1x8x128xf32>
    %42 = vector.shape_cast %41 : vector<1x8x128xf32> to vector<8x128xf32>
    %43 = vector.shape_cast %40 : vector<8x128xf32> to vector<1x8x128xf32>
    tpu.vector_store %arg2[%c10, %c0_21, %c0_22], %43 {strides = array<i32>} : memref<13x8x128xf32, #tpu.memory_space<vmem>>, vector<1x8x128xf32>,
    %cst_23 = arith.constant 5.000000e-01 : f32
    %44 = vector.broadcast %cst_23 : f32 to vector<8x128xf32>
    %45 = arith.mulf %0, %44 : vector<8x128xf32>
    %46 = math.sin %45 : vector<8x128xf32>
    %c5 = arith.constant 5 : index
    %c0_24 = arith.constant 0 : index
    %c0_25 = arith.constant 0 : index
    %47 = vector.load %arg2[%c5, %c0_24, %c0_25] : memref<13x8x128xf32, #tpu.memory_space<vmem>>, vector<1x8x128xf32>
    %48 = vector.shape_cast %47 : vector<1x8x128xf32> to vector<8x128xf32>
    %49 = vector.shape_cast %46 : vector<8x128xf32> to vector<1x8x128xf32>
    tpu.vector_store %arg2[%c5, %c0_24, %c0_25], %49 {strides = array<i32>} : memref<13x8x128xf32, #tpu.memory_space<vmem>>, vector<1x8x128xf32>,
    %50 = math.cos %45 : vector<8x128xf32>
    %c11 = arith.constant 11 : index
    %c0_26 = arith.constant 0 : index
    %c0_27 = arith.constant 0 : index
    %51 = vector.load %arg2[%c11, %c0_26, %c0_27] : memref<13x8x128xf32, #tpu.memory_space<vmem>>, vector<1x8x128xf32>
    %52 = vector.shape_cast %51 : vector<1x8x128xf32> to vector<8x128xf32>
    %53 = vector.shape_cast %50 : vector<8x128xf32> to vector<1x8x128xf32>
    tpu.vector_store %arg2[%c11, %c0_26, %c0_27], %53 {strides = array<i32>} : memref<13x8x128xf32, #tpu.memory_space<vmem>>, vector<1x8x128xf32>,
    %cst_28 = arith.constant 0.333333343 : f32
    %54 = vector.broadcast %cst_28 : f32 to vector<8x128xf32>
    %55 = arith.mulf %0, %54 : vector<8x128xf32>
    %56 = math.sin %55 : vector<8x128xf32>
    %c6 = arith.constant 6 : index
    %c0_29 = arith.constant 0 : index
    %c0_30 = arith.constant 0 : index
    %57 = vector.load %arg2[%c6, %c0_29, %c0_30] : memref<13x8x128xf32, #tpu.memory_space<vmem>>, vector<1x8x128xf32>
    %58 = vector.shape_cast %57 : vector<1x8x128xf32> to vector<8x128xf32>
    %59 = vector.shape_cast %56 : vector<8x128xf32> to vector<1x8x128xf32>
    tpu.vector_store %arg2[%c6, %c0_29, %c0_30], %59 {strides = array<i32>} : memref<13x8x128xf32, #tpu.memory_space<vmem>>, vector<1x8x128xf32>,
    %60 = math.cos %55 : vector<8x128xf32>
    %c12 = arith.constant 12 : index
    %c0_31 = arith.constant 0 : index
    %c0_32 = arith.constant 0 : index
    %61 = vector.load %arg2[%c12, %c0_31, %c0_32] : memref<13x8x128xf32, #tpu.memory_space<vmem>>, vector<1x8x128xf32>
    %62 = vector.shape_cast %61 : vector<1x8x128xf32> to vector<8x128xf32>
    %63 = vector.shape_cast %60 : vector<8x128xf32> to vector<1x8x128xf32>
    tpu.vector_store %arg2[%c12, %c0_31, %c0_32], %63 {strides = array<i32>} : memref<13x8x128xf32, #tpu.memory_space<vmem>>, vector<1x8x128xf32>,
    return
  }
  func.func @transform_0(%arg0: i32) -> (i32, i32) {
    %c0_i32 = arith.constant 0 : i32
    %c0_i32_0 = arith.constant 0 : i32
    return %arg0, %c0_i32 : i32, i32
  }
  func.func @transform_1(%arg0: i32) -> (i32, i32, i32) {
    %c0_i32 = arith.constant 0 : i32
    %c0_i32_0 = arith.constant 0 : i32
    %c0_i32_1 = arith.constant 0 : i32
    return %c0_i32, %arg0, %c0_i32_0 : i32, i32, i32
  }
}

</mosaic_0001>

<llo_original>
// kernel: tpu_custom_call.1
$region0: #{tpu_custom_call.1}
  #allocation0 [shape = 'u32[]', space=smem, size = 0x4, offset = 0x4, fixed_abs, tag = 'smem constant byte address 0x4 - core index']
  #allocation1 [shape = 'u32[144,128]{1,0:T(1,128)}', space=vmem, size = 0x12000, scoped, tag = 'internal scratch']
  %s0 = inlined_call_operand.hbm [shape: f32[8,128], index: 0, kind: input, shape index: {}]
  %s1 = inlined_call_operand.hbm [shape: f32[13,8,128], index: 1, kind: output, shape index: {}]
  %s2 = sld [smem:[#allocation0]]
  $region18: #{tpu_custom_call.1} parent=0
    _
  %s4 = ssub.s32 1, %s2
  %s5 = scalar_select 0, %s4, %s2
  $region1: #{tpu_custom_call.1} parent=0
    #allocation2 [shape = 'u8[4096]{0}', space=vmem, size = 0x1000, scoped, tag = 'input window, operand 0, single buffered']
    #allocation3 [shape = 's32[1]{0}', space=sflag, size = 0x4, scoped, tag = 'scoped memory for tpu_custom_call.1']
    #allocation4 [shape = 's32[1]{0}', space=sflag, size = 0x4, scoped, tag = 'scoped memory for tpu_custom_call.1']
    #allocation5 [shape = 'u8[53248]{0}', space=vmem, size = 0xd000, scoped, tag = 'output window, operand 0, single buffered']
    %6 = vsyncpa [#allocation3], 0
    %7 = vsyncpa [#allocation4], 0
    // Predicated region
    $region2: #{tpu_custom_call.1} parent=1 // pred_check
      _
    $region3: #{tpu_custom_call.1} parent=1 // pred_check_branch
      %9 = sbr.rel (0) target = $region5
    $region4: #{tpu_custom_call.1} parent=1 // pred_region
      %s11 = ssub.s32 128, 128
      %12 = vsyncadd [#allocation3], %s11
      %s14 = sshll.u32 [#allocation2], 4
      %s15 = int_to_ptr.vmem [resolvable:$true] %s14
      %17 = dma.hbm_to_vmem [thread:$0]  %s0, 128, %s15, [#allocation3]
    $region5: #{tpu_custom_call.1} parent=1 // pred_fallthru
      _
    // Predicated region
    $region6: #{tpu_custom_call.1} parent=1 // pred_check
      _
    $region7: #{tpu_custom_call.1} parent=1 // pred_check_branch
      %19 = sbr.rel (0) target = $region9
    $region8: #{tpu_custom_call.1} parent=1 // pred_region
      %20 = dma.done [#allocation3], 128
    $region9: #{tpu_custom_call.1} parent=1 // pred_fallthru
      _
    %v21 = vld [vmem:[#allocation2] sm:$0xff]
    %22 = vst [vmem:[#allocation5] sm:$0xff] %v21
    %v23 = vand.u32 2147483647, %v21
    %vm24 = vcmp.le.f32.partialorder %v23, 0.7853982
    %vm25 = vcmp.lt.s32.totalorder %v21, 0
    %v26 = vand.u32 %v21, 2139095040
    %v27 = vshrl.u32 %v26, 23
    %v28 = vsub.s32 %v27, 127
    %v29 = vand.u32 2147483647, %v21
    %v30 = vand.u32 %v29, 8388607
    %v31 = vor.u32 %v30, 8388608
    %v32 = vsub.s32 0, %v31
    %v33 = vadd.s32 %v28, 1
    %vm34 = vcmp.gt.s32.totalorder %v33, 0
    %v35 = vsel %vm34, %v33, 0
    %v36 = vshrl.u32 %v35, 5
    %v37 = vand.u32 %v35, 31
    %v38 = vsub.s32 32, %v37
    %v39 = vshrl.u32 683565275, %v38
    %v40 = vshll.u32 683565275, %v37
    %v41 = vshrl.u32 2475754826, %v38
    %v42 = vor.u32 %v40, %v41
    %v43 = vshll.u32 2475754826, %v37
    %v44 = vshrl.u32 2131351028, %v38
    %v45 = vor.u32 %v43, %v44
    %v46 = vshll.u32 2131351028, %v37
    %v47 = vshrl.u32 2102212464, %v38
    %v48 = vor.u32 %v46, %v47
    %v49 = vshll.u32 2102212464, %v37
    %v50 = vshrl.u32 920167782, %v38
    %v51 = vor.u32 %v49, %v50
    %v52 = vshll.u32 920167782, %v37
    %v53 = vshrl.u32 1326507024, %v38
    %v54 = vor.u32 %v52, %v53
    %vm55 = vcmp.lt.s32.totalorder %v36, 1
    %vm56 = vcmp.lt.s32.totalorder %v36, 2
    %vm57 = vcmp.lt.s32.totalorder %v36, 3
    %vm58 = vcmp.lt.s32.totalorder %v36, 4
    %v59 = vsel %vm55, %v39, %v42
    %v60 = vsel %vm58, %v48, 2102212464
    %v61 = vsel %vm57, %v45, %v60
    %v62 = vsel %vm56, %v59, %v61
    %v63 = vsel %vm55, %v42, %v45
    %v64 = vsel %vm58, %v51, 920167782
    %v65 = vsel %vm57, %v48, %v64
    %v66 = vsel %vm56, %v63, %v65
    %v67 = vsel %vm55, %v45, %v48
    %v68 = vsel %vm58, %v54, 1326507024
    %v69 = vsel %vm57, %v51, %v68
    %v70 = vsel %vm56, %v67, %v69
    %v71 = vshll.u32 %v31, 8
    %v72 = vmul.u32.u64.compose %v71, %v70
    %v73 = vextract.low.u32 %v72
    %v74 = vextract.high.u32 %v72
    %v75 = vmul.u32.u64.compose %v71, %v66
    %v76 = vextract.low.u32 %v75
    %v77 = vextract.high.u32 %v75
    %v78 = vmul.u32 %v71, %v62
    %v79 = vadd.s32 %v74, %v76
    %vm80 = vc.u32 %v74, %v76
    %v81 = vadd.s32 %v77, 1
    %v82 = vsel %vm80, %v81, %v77
    %v83 = vadd.s32 %v78, %v82
    %v84 = vadd.s32 %v83, 536870912
    %v85 = vshrl.u32 %v84, 30
    %v86 = vshll.u32 %v85, 30
    %v87 = vsub.s32 %v83, %v86
    %vm88 = vcmp.lt.s32.totalorder %v87, 0
    %v89 = vsub.s32 0, %v87
    %v90 = vsel %vm88, %v89, %v87
    %v91 = vclz %v90
    %v92 = vsub.s32 %v91, 2
    %vm93 = vcmp.gt.s32.totalorder 0, %v92
    %v94 = vsel %vm93, 0, %v92
    %v95 = vsub.s32 32, %v94
    %v96 = vshll.u32 %v87, %v94
    %v97 = vshrl.u32 %v79, %v95
    %v98 = vor.u32 %v96, %v97
    %v99 = vsub.s32 4294967266, %v94
    %v100 = vadd.s32 %v99, 127
    %v101 = vshll.u32 %v100, 23
    %v102 = vor.u32 4788187, %v101
    %v103 = vand.u32 2147483647, %v102
    %v105 = vcvt.s32.f32 %v98
    %v106 = vmul.f32 %v105, %v103
    %v107 = vxor.u32 %v106, 2147483648
    %v108 = vsel %vm25, %v107, %v106
    %v109 = vsub.s32 4, %v85
    %v110 = vsel %vm25, %v109, %v85
    %v111 = vsel %vm24, %v21, %v108
    %v112 = vsel %vm24, 0, %v110
    %v113 = vcosq.f32.pop %v111
    %v114 = vsinq.f32.pop %v111
    %vm115 = vweird.f32 %v21
    %v116 = vadd.s32 %v112, 3
    %v117 = vand.u32 %v116, 3
    %vm118 = vcmp.lt.s32.totalorder %v117, 2
    %vm119 = vcmp.eq.s32.totalorder %v117, 0
    %v120 = vxor.u32 %v114, 2147483648
    %v121 = vsel %vm119, %v113, %v120
    %vm122 = vcmp.eq.s32.totalorder %v117, 2
    %v123 = vxor.u32 %v113, 2147483648
    %v124 = vsel %vm122, %v123, %v114
    %v125 = vsel %vm118, %v121, %v124
    %v126 = vsel %vm115, nan, %v125
    %s127 = scalar_lea.vmem [#allocation5], 8
    %128 = vst [vmem:[%s127] sm:$0xff] %v126
    %v129 = vand.u32 2147483647, %v21
    %vm130 = vcmp.le.f32.partialorder %v129, 0.7853982
    %vm131 = vcmp.lt.s32.totalorder %v21, 0
    %v132 = vand.u32 %v21, 2139095040
    %v133 = vshrl.u32 %v132, 23
    %v134 = vsub.s32 %v133, 127
    %v135 = vand.u32 2147483647, %v21
    %v136 = vand.u32 %v135, 8388607
    %v137 = vor.u32 %v136, 8388608
    %v138 = vsub.s32 0, %v137
    %v139 = vadd.s32 %v134, 1
    %vm140 = vcmp.gt.s32.totalorder %v139, 0
    %v141 = vsel %vm140, %v139, 0
    %v142 = vshrl.u32 %v141, 5
    %v143 = vand.u32 %v141, 31
    %v144 = vsub.s32 32, %v143
    %v145 = vshrl.u32 683565275, %v144
    %v146 = vshll.u32 683565275, %v143
    %v147 = vshrl.u32 2475754826, %v144
    %v148 = vor.u32 %v146, %v147
    %v149 = vshll.u32 2475754826, %v143
    %v150 = vshrl.u32 2131351028, %v144
    %v151 = vor.u32 %v149, %v150
    %v152 = vshll.u32 2131351028, %v143
    %v153 = vshrl.u32 2102212464, %v144
    %v154 = vor.u32 %v152, %v153
    %v155 = vshll.u32 2102212464, %v143
    %v156 = vshrl.u32 920167782, %v144
    %v157 = vor.u32 %v155, %v156
    %v158 = vshll.u32 920167782, %v143
    %v159 = vshrl.u32 1326507024, %v144
    %v160 = vor.u32 %v158, %v159
    %vm161 = vcmp.lt.s32.totalorder %v142, 1
    %vm162 = vcmp.lt.s32.totalorder %v142, 2
    %vm163 = vcmp.lt.s32.totalorder %v142, 3
    %vm164 = vcmp.lt.s32.totalorder %v142, 4
    %v165 = vsel %vm161, %v145, %v148
    %v166 = vsel %vm164, %v154, 2102212464
    %v167 = vsel %vm163, %v151, %v166
    %v168 = vsel %vm162, %v165, %v167
    %v169 = vsel %vm161, %v148, %v151
    %v170 = vsel %vm164, %v157, 920167782
    %v171 = vsel %vm163, %v154, %v170
    %v172 = vsel %vm162, %v169, %v171
    %v173 = vsel %vm161, %v151, %v154
    %v174 = vsel %vm164, %v160, 1326507024
    %v175 = vsel %vm163, %v157, %v174
    %v176 = vsel %vm162, %v173, %v175
    %v177 = vshll.u32 %v137, 8
    %v178 = vmul.u32.u64.compose %v177, %v176
    %v179 = vextract.low.u32 %v178
    %v180 = vextract.high.u32 %v178
    %v181 = vmul.u32.u64.compose %v177, %v172
    %v182 = vextract.low.u32 %v181
    %v183 = vextract.high.u32 %v181
    %v184 = vmul.u32 %v177, %v168
    %v185 = vadd.s32 %v180, %v182
    %vm186 = vc.u32 %v180, %v182
    %v187 = vadd.s32 %v183, 1
    %v188 = vsel %vm186, %v187, %v183
    %v189 = vadd.s32 %v184, %v188
    %v190 = vadd.s32 %v189, 536870912
    %v191 = vshrl.u32 %v190, 30
    %v192 = vshll.u32 %v191, 30
    %v193 = vsub.s32 %v189, %v192
    %vm194 = vcmp.lt.s32.totalorder %v193, 0
    %v195 = vsub.s32 0, %v193
    %v196 = vsel %vm194, %v195, %v193
    %v197 = vclz %v196
    %v198 = vsub.s32 %v197, 2
    %vm199 = vcmp.gt.s32.totalorder 0, %v198
    %v200 = vsel %vm199, 0, %v198
    %v201 = vsub.s32 32, %v200
    %v202 = vshll.u32 %v193, %v200
    %v203 = vshrl.u32 %v185, %v201
    %v204 = vor.u32 %v202, %v203
    %v205 = vsub.s32 4294967266, %v200
    %v206 = vadd.s32 %v205, 127
    %v207 = vshll.u32 %v206, 23
    %v208 = vor.u32 4788187, %v207
    %v209 = vand.u32 2147483647, %v208
    %v211 = vcvt.s32.f32 %v204
    %v212 = vmul.f32 %v211, %v209
    %v213 = vxor.u32 %v212, 2147483648
    %v214 = vsel %vm131, %v213, %v212
    %v215 = vsub.s32 4, %v191
    %v216 = vsel %vm131, %v215, %v191
    %v217 = vsel %vm130, %v21, %v214
    %v218 = vsel %vm130, 0, %v216
    %v219 = vcosq.f32.pop %v217
    %v220 = vsinq.f32.pop %v217
    %vm221 = vweird.f32 %v21
    %v222 = vand.u32 %v218, 3
    %vm223 = vcmp.lt.s32.totalorder %v222, 2
    %vm224 = vcmp.eq.s32.totalorder %v222, 0
    %v225 = vxor.u32 %v220, 2147483648
    %v226 = vsel %vm224, %v219, %v225
    %vm227 = vcmp.eq.s32.totalorder %v222, 2
    %v228 = vxor.u32 %v219, 2147483648
    %v229 = vsel %vm227, %v228, %v220
    %v230 = vsel %vm223, %v226, %v229
    %v231 = vsel %vm221, nan, %v230
    %s232 = scalar_lea.vmem [#allocation5], 56
    %233 = vst [vmem:[%s232] sm:$0xff] %v231
    %v234 = vmul.f32 %v21, 2.0
    %v235 = vand.u32 2147483647, %v234
    %vm236 = vcmp.le.f32.partialorder %v235, 0.7853982
    %vm237 = vcmp.lt.s32.totalorder %v234, 0
    %v238 = vand.u32 %v234, 2139095040
    %v239 = vshrl.u32 %v238, 23
    %v240 = vsub.s32 %v239, 127
    %v241 = vand.u32 2147483647, %v234
    %v242 = vand.u32 %v241, 8388607
    %v243 = vor.u32 %v242, 8388608
    %v244 = vsub.s32 0, %v243
    %v245 = vadd.s32 %v240, 1
    %vm246 = vcmp.gt.s32.totalorder %v245, 0
    %v247 = vsel %vm246, %v245, 0
    %v248 = vshrl.u32 %v247, 5
    %v249 = vand.u32 %v247, 31
    %v250 = vsub.s32 32, %v249
    %v251 = vshrl.u32 683565275, %v250
    %v252 = vshll.u32 683565275, %v249
    %v253 = vshrl.u32 2475754826, %v250
    %v254 = vor.u32 %v252, %v253
    %v255 = vshll.u32 2475754826, %v249
    %v256 = vshrl.u32 2131351028, %v250
    %v257 = vor.u32 %v255, %v256
    %v258 = vshll.u32 2131351028, %v249
    %v259 = vshrl.u32 2102212464, %v250
    %v260 = vor.u32 %v258, %v259
    %v261 = vshll.u32 2102212464, %v249
    %v262 = vshrl.u32 920167782, %v250
    %v263 = vor.u32 %v261, %v262
    %v264 = vshll.u32 920167782, %v249
    %v265 = vshrl.u32 1326507024, %v250
    %v266 = vor.u32 %v264, %v265
    %vm267 = vcmp.lt.s32.totalorder %v248, 1
    %vm268 = vcmp.lt.s32.totalorder %v248, 2
    %vm269 = vcmp.lt.s32.totalorder %v248, 3
    %vm270 = vcmp.lt.s32.totalorder %v248, 4
    %v271 = vsel %vm267, %v251, %v254
    %v272 = vsel %vm270, %v260, 2102212464
    %v273 = vsel %vm269, %v257, %v272
    %v274 = vsel %vm268, %v271, %v273
    %v275 = vsel %vm267, %v254, %v257
    %v276 = vsel %vm270, %v263, 920167782
    %v277 = vsel %vm269, %v260, %v276
    %v278 = vsel %vm268, %v275, %v277
    %v279 = vsel %vm267, %v257, %v260
    %v280 = vsel %vm270, %v266, 1326507024
    %v281 = vsel %vm269, %v263, %v280
    %v282 = vsel %vm268, %v279, %v281
    %v283 = vshll.u32 %v243, 8
    %v284 = vmul.u32.u64.compose %v283, %v282
    %v285 = vextract.low.u32 %v284
    %v286 = vextract.high.u32 %v284
    %v287 = vmul.u32.u64.compose %v283, %v278
    %v288 = vextract.low.u32 %v287
    %v289 = vextract.high.u32 %v287
    %v290 = vmul.u32 %v283, %v274
    %v291 = vadd.s32 %v286, %v288
    %vm292 = vc.u32 %v286, %v288
    %v293 = vadd.s32 %v289, 1
    %v294 = vsel %vm292, %v293, %v289
    %v295 = vadd.s32 %v290, %v294
    %v296 = vadd.s32 %v295, 536870912
    %v297 = vshrl.u32 %v296, 30
    %v298 = vshll.u32 %v297, 30
    %v299 = vsub.s32 %v295, %v298
    %vm300 = vcmp.lt.s32.totalorder %v299, 0
    %v301 = vsub.s32 0, %v299
    %v302 = vsel %vm300, %v301, %v299
    %v303 = vclz %v302
    %v304 = vsub.s32 %v303, 2
    %vm305 = vcmp.gt.s32.totalorder 0, %v304
    %v306 = vsel %vm305, 0, %v304
    %v307 = vsub.s32 32, %v306
    %v308 = vshll.u32 %v299, %v306
    %v309 = vshrl.u32 %v291, %v307
    %v310 = vor.u32 %v308, %v309
    %v311 = vsub.s32 4294967266, %v306
    %v312 = vadd.s32 %v311, 127
    %v313 = vshll.u32 %v312, 23
    %v314 = vor.u32 4788187, %v313
    %v315 = vand.u32 2147483647, %v314
    %v317 = vcvt.s32.f32 %v310
    %v318 = vmul.f32 %v317, %v315
    %v319 = vxor.u32 %v318, 2147483648
    %v320 = vsel %vm237, %v319, %v318
    %v321 = vsub.s32 4, %v297
    %v322 = vsel %vm237, %v321, %v297
    %v323 = vsel %vm236, %v234, %v320
    %v324 = vsel %vm236, 0, %v322
    %v325 = vcosq.f32.pop %v323
    %v326 = vsinq.f32.pop %v323
    %vm327 = vweird.f32 %v234
    %v328 = vadd.s32 %v324, 3
    %v329 = vand.u32 %v328, 3
    %vm330 = vcmp.lt.s32.totalorder %v329, 2
    %vm331 = vcmp.eq.s32.totalorder %v329, 0
    %v332 = vxor.u32 %v326, 2147483648
    %v333 = vsel %vm331, %v325, %v332
    %vm334 = vcmp.eq.s32.totalorder %v329, 2
    %v335 = vxor.u32 %v325, 2147483648
    %v336 = vsel %vm334, %v335, %v326
    %v337 = vsel %vm330, %v333, %v336
    %v338 = vsel %vm327, nan, %v337
    %s339 = scalar_lea.vmem [#allocation5], 16
    %340 = vst [vmem:[%s339] sm:$0xff] %v338
    %v341 = vand.u32 2147483647, %v234
    %vm342 = vcmp.le.f32.partialorder %v341, 0.7853982
    %vm343 = vcmp.lt.s32.totalorder %v234, 0
    %v344 = vand.u32 %v234, 2139095040
    %v345 = vshrl.u32 %v344, 23
    %v346 = vsub.s32 %v345, 127
    %v347 = vand.u32 2147483647, %v234
    %v348 = vand.u32 %v347, 8388607
    %v349 = vor.u32 %v348, 8388608
    %v350 = vsub.s32 0, %v349
    %v351 = vadd.s32 %v346, 1
    %vm352 = vcmp.gt.s32.totalorder %v351, 0
    %v353 = vsel %vm352, %v351, 0
    %v354 = vshrl.u32 %v353, 5
    %v355 = vand.u32 %v353, 31
    %v356 = vsub.s32 32, %v355
    %v357 = vshrl.u32 683565275, %v356
    %v358 = vshll.u32 683565275, %v355
    %v359 = vshrl.u32 2475754826, %v356
    %v360 = vor.u32 %v358, %v359
    %v361 = vshll.u32 2475754826, %v355
    %v362 = vshrl.u32 2131351028, %v356
    %v363 = vor.u32 %v361, %v362
    %v364 = vshll.u32 2131351028, %v355
    %v365 = vshrl.u32 2102212464, %v356
    %v366 = vor.u32 %v364, %v365
    %v367 = vshll.u32 2102212464, %v355
    %v368 = vshrl.u32 920167782, %v356
    %v369 = vor.u32 %v367, %v368
    %v370 = vshll.u32 920167782, %v355
    %v371 = vshrl.u32 1326507024, %v356
    %v372 = vor.u32 %v370, %v371
    %vm373 = vcmp.lt.s32.totalorder %v354, 1
    %vm374 = vcmp.lt.s32.totalorder %v354, 2
    %vm375 = vcmp.lt.s32.totalorder %v354, 3
    %vm376 = vcmp.lt.s32.totalorder %v354, 4
    %v377 = vsel %vm373, %v357, %v360
    %v378 = vsel %vm376, %v366, 2102212464
    %v379 = vsel %vm375, %v363, %v378
    %v380 = vsel %vm374, %v377, %v379
    %v381 = vsel %vm373, %v360, %v363
    %v382 = vsel %vm376, %v369, 920167782
    %v383 = vsel %vm375, %v366, %v382
    %v384 = vsel %vm374, %v381, %v383
    %v385 = vsel %vm373, %v363, %v366
    %v386 = vsel %vm376, %v372, 1326507024
    %v387 = vsel %vm375, %v369, %v386
    %v388 = vsel %vm374, %v385, %v387
    %v389 = vshll.u32 %v349, 8
    %v390 = vmul.u32.u64.compose %v389, %v388
    %v391 = vextract.low.u32 %v390
    %v392 = vextract.high.u32 %v390
    %v393 = vmul.u32.u64.compose %v389, %v384
    %v394 = vextract.low.u32 %v393
    %v395 = vextract.high.u32 %v393
    %v396 = vmul.u32 %v389, %v380
    %v397 = vadd.s32 %v392, %v394
    %vm398 = vc.u32 %v392, %v394
    %v399 = vadd.s32 %v395, 1
    %v400 = vsel %vm398, %v399, %v395
    %v401 = vadd.s32 %v396, %v400
    %v402 = vadd.s32 %v401, 536870912
    %v403 = vshrl.u32 %v402, 30
    %v404 = vshll.u32 %v403, 30
    %v405 = vsub.s32 %v401, %v404
    %vm406 = vcmp.lt.s32.totalorder %v405, 0
    %v407 = vsub.s32 0, %v405
    %v408 = vsel %vm406, %v407, %v405
    %v409 = vclz %v408
    %v410 = vsub.s32 %v409, 2
    %vm411 = vcmp.gt.s32.totalorder 0, %v410
    %v412 = vsel %vm411, 0, %v410
    %v413 = vsub.s32 32, %v412
    %v414 = vshll.u32 %v405, %v412
    %v415 = vshrl.u32 %v397, %v413
    %v416 = vor.u32 %v414, %v415
    %v417 = vsub.s32 4294967266, %v412
    %v418 = vadd.s32 %v417, 127
    %v419 = vshll.u32 %v418, 23
    %v420 = vor.u32 4788187, %v419
    %v421 = vand.u32 2147483647, %v420
    %v423 = vcvt.s32.f32 %v416
    %v424 = vmul.f32 %v423, %v421
    %v425 = vxor.u32 %v424, 2147483648
    %v426 = vsel %vm343, %v425, %v424
    %v427 = vsub.s32 4, %v403
    %v428 = vsel %vm343, %v427, %v403
    %v429 = vsel %vm342, %v234, %v426
    %v430 = vsel %vm342, 0, %v428
    %v431 = vcosq.f32.pop %v429
    %v432 = vsinq.f32.pop %v429
    %vm433 = vweird.f32 %v234
    %v434 = vand.u32 %v430, 3
    %vm435 = vcmp.lt.s32.totalorder %v434, 2
    %vm436 = vcmp.eq.s32.totalorder %v434, 0
    %v437 = vxor.u32 %v432, 2147483648
    %v438 = vsel %vm436, %v431, %v437
    %vm439 = vcmp.eq.s32.totalorder %v434, 2
    %v440 = vxor.u32 %v431, 2147483648
    %v441 = vsel %vm439, %v440, %v432
    %v442 = vsel %vm435, %v438, %v441
    %v443 = vsel %vm433, nan, %v442
    %s444 = scalar_lea.vmem [#allocation5], 64
    %445 = vst [vmem:[%s444] sm:$0xff] %v443
    %v446 = vmul.f32 %v21, 3.0
    %v447 = vand.u32 2147483647, %v446
    %vm448 = vcmp.le.f32.partialorder %v447, 0.7853982
    %vm449 = vcmp.lt.s32.totalorder %v446, 0
    %v450 = vand.u32 %v446, 2139095040
    %v451 = vshrl.u32 %v450, 23
    %v452 = vsub.s32 %v451, 127
    %v453 = vand.u32 2147483647, %v446
    %v454 = vand.u32 %v453, 8388607
    %v455 = vor.u32 %v454, 8388608
    %v456 = vsub.s32 0, %v455
    %v457 = vadd.s32 %v452, 1
    %vm458 = vcmp.gt.s32.totalorder %v457, 0
    %v459 = vsel %vm458, %v457, 0
    %v460 = vshrl.u32 %v459, 5
    %v461 = vand.u32 %v459, 31
    %v462 = vsub.s32 32, %v461
    %v463 = vshrl.u32 683565275, %v462
    %v464 = vshll.u32 683565275, %v461
    %v465 = vshrl.u32 2475754826, %v462
    %v466 = vor.u32 %v464, %v465
    %v467 = vshll.u32 2475754826, %v461
    %v468 = vshrl.u32 2131351028, %v462
    %v469 = vor.u32 %v467, %v468
    %v470 = vshll.u32 2131351028, %v461
    %v471 = vshrl.u32 2102212464, %v462
    %v472 = vor.u32 %v470, %v471
    %v473 = vshll.u32 2102212464, %v461
    %v474 = vshrl.u32 920167782, %v462
    %v475 = vor.u32 %v473, %v474
    %v476 = vshll.u32 920167782, %v461
    %v477 = vshrl.u32 1326507024, %v462
    %v478 = vor.u32 %v476, %v477
    %vm479 = vcmp.lt.s32.totalorder %v460, 1
    %vm480 = vcmp.lt.s32.totalorder %v460, 2
    %vm481 = vcmp.lt.s32.totalorder %v460, 3
    %vm482 = vcmp.lt.s32.totalorder %v460, 4
    %v483 = vsel %vm479, %v463, %v466
    %v484 = vsel %vm482, %v472, 2102212464
    %v485 = vsel %vm481, %v469, %v484
    %v486 = vsel %vm480, %v483, %v485
    %v487 = vsel %vm479, %v466, %v469
    %v488 = vsel %vm482, %v475, 920167782
    %v489 = vsel %vm481, %v472, %v488
    %v490 = vsel %vm480, %v487, %v489
    %v491 = vsel %vm479, %v469, %v472
    %v492 = vsel %vm482, %v478, 1326507024
    %v493 = vsel %vm481, %v475, %v492
    %v494 = vsel %vm480, %v491, %v493
    %v495 = vshll.u32 %v455, 8
    %v496 = vmul.u32.u64.compose %v495, %v494
    %v497 = vextract.low.u32 %v496
    %v498 = vextract.high.u32 %v496
    %v499 = vmul.u32.u64.compose %v495, %v490
    %v500 = vextract.low.u32 %v499
    %v501 = vextract.high.u32 %v499
    %v502 = vmul.u32 %v495, %v486
    %v503 = vadd.s32 %v498, %v500
    %vm504 = vc.u32 %v498, %v500
    %v505 = vadd.s32 %v501, 1
    %v506 = vsel %vm504, %v505, %v501
    %v507 = vadd.s32 %v502, %v506
    %v508 = vadd.s32 %v507, 536870912
    %v509 = vshrl.u32 %v508, 30
    %v510 = vshll.u32 %v509, 30
    %v511 = vsub.s32 %v507, %v510
    %vm512 = vcmp.lt.s32.totalorder %v511, 0
    %v513 = vsub.s32 0, %v511
    %v514 = vsel %vm512, %v513, %v511
    %v515 = vclz %v514
    %v516 = vsub.s32 %v515, 2
    %vm517 = vcmp.gt.s32.totalorder 0, %v516
    %v518 = vsel %vm517, 0, %v516
    %v519 = vsub.s32 32, %v518
    %v520 = vshll.u32 %v511, %v518
    %v521 = vshrl.u32 %v503, %v519
    %v522 = vor.u32 %v520, %v521
    %v523 = vsub.s32 4294967266, %v518
    %v524 = vadd.s32 %v523, 127
    %v525 = vshll.u32 %v524, 23
    %v526 = vor.u32 4788187, %v525
    %v527 = vand.u32 2147483647, %v526
    %v529 = vcvt.s32.f32 %v522
    %v530 = vmul.f32 %v529, %v527
    %v531 = vxor.u32 %v530, 2147483648
    %v532 = vsel %vm449, %v531, %v530
    %v533 = vsub.s32 4, %v509
    %v534 = vsel %vm449, %v533, %v509
    %v535 = vsel %vm448, %v446, %v532
    %v536 = vsel %vm448, 0, %v534
    %v537 = vcosq.f32.pop %v535
    %v538 = vsinq.f32.pop %v535
    %vm539 = vweird.f32 %v446
    %v540 = vadd.s32 %v536, 3
    %v541 = vand.u32 %v540, 3
    %vm542 = vcmp.lt.s32.totalorder %v541, 2
    %vm543 = vcmp.eq.s32.totalorder %v541, 0
    %v544 = vxor.u32 %v538, 2147483648
    %v545 = vsel %vm543, %v537, %v544
    %vm546 = vcmp.eq.s32.totalorder %v541, 2
    %v547 = vxor.u32 %v537, 2147483648
    %v548 = vsel %vm546, %v547, %v538
    %v549 = vsel %vm542, %v545, %v548
    %v550 = vsel %vm539, nan, %v549
    %s551 = scalar_lea.vmem [#allocation5], 24
    %552 = vst [vmem:[%s551] sm:$0xff] %v550
    %v553 = vand.u32 2147483647, %v446
    %vm554 = vcmp.le.f32.partialorder %v553, 0.7853982
    %vm555 = vcmp.lt.s32.totalorder %v446, 0
    %v556 = vand.u32 %v446, 2139095040
    %v557 = vshrl.u32 %v556, 23
    %v558 = vsub.s32 %v557, 127
    %v559 = vand.u32 2147483647, %v446
    %v560 = vand.u32 %v559, 8388607
    %v561 = vor.u32 %v560, 8388608
    %v562 = vsub.s32 0, %v561
    %v563 = vadd.s32 %v558, 1
    %vm564 = vcmp.gt.s32.totalorder %v563, 0
    %v565 = vsel %vm564, %v563, 0
    %v566 = vshrl.u32 %v565, 5
    %v567 = vand.u32 %v565, 31
    %v568 = vsub.s32 32, %v567
    %v569 = vshrl.u32 683565275, %v568
    %v570 = vshll.u32 683565275, %v567
    %v571 = vshrl.u32 2475754826, %v568
    %v572 = vor.u32 %v570, %v571
    %v573 = vshll.u32 2475754826, %v567
    %v574 = vshrl.u32 2131351028, %v568
    %v575 = vor.u32 %v573, %v574
    %v576 = vshll.u32 2131351028, %v567
    %v577 = vshrl.u32 2102212464, %v568
    %v578 = vor.u32 %v576, %v577
    %v579 = vshll.u32 2102212464, %v567
    %v580 = vshrl.u32 920167782, %v568
    %v581 = vor.u32 %v579, %v580
    %v582 = vshll.u32 920167782, %v567
    %v583 = vshrl.u32 1326507024, %v568
    %v584 = vor.u32 %v582, %v583
    %vm585 = vcmp.lt.s32.totalorder %v566, 1
    %vm586 = vcmp.lt.s32.totalorder %v566, 2
    %vm587 = vcmp.lt.s32.totalorder %v566, 3
    %vm588 = vcmp.lt.s32.totalorder %v566, 4
    %v589 = vsel %vm585, %v569, %v572
    %v590 = vsel %vm588, %v578, 2102212464
    %v591 = vsel %vm587, %v575, %v590
    %v592 = vsel %vm586, %v589, %v591
    %v593 = vsel %vm585, %v572, %v575
    %v594 = vsel %vm588, %v581, 920167782
    %v595 = vsel %vm587, %v578, %v594
    %v596 = vsel %vm586, %v593, %v595
    %v597 = vsel %vm585, %v575, %v578
    %v598 = vsel %vm588, %v584, 1326507024
    %v599 = vsel %vm587, %v581, %v598
    %v600 = vsel %vm586, %v597, %v599
    %v601 = vshll.u32 %v561, 8
    %v602 = vmul.u32.u64.compose %v601, %v600
    %v603 = vextract.low.u32 %v602
    %v604 = vextract.high.u32 %v602
    %v605 = vmul.u32.u64.compose %v601, %v596
    %v606 = vextract.low.u32 %v605
    %v607 = vextract.high.u32 %v605
    %v608 = vmul.u32 %v601, %v592
    %v609 = vadd.s32 %v604, %v606
    %vm610 = vc.u32 %v604, %v606
    %v611 = vadd.s32 %v607, 1
    %v612 = vsel %vm610, %v611, %v607
    %v613 = vadd.s32 %v608, %v612
    %v614 = vadd.s32 %v613, 536870912
    %v615 = vshrl.u32 %v614, 30
    %v616 = vshll.u32 %v615, 30
    %v617 = vsub.s32 %v613, %v616
    %vm618 = vcmp.lt.s32.totalorder %v617, 0
    %v619 = vsub.s32 0, %v617
    %v620 = vsel %vm618, %v619, %v617
    %v621 = vclz %v620
    %v622 = vsub.s32 %v621, 2
    %vm623 = vcmp.gt.s32.totalorder 0, %v622
    %v624 = vsel %vm623, 0, %v622
    %v625 = vsub.s32 32, %v624
    %v626 = vshll.u32 %v617, %v624
    %v627 = vshrl.u32 %v609, %v625
    %v628 = vor.u32 %v626, %v627
    %v629 = vsub.s32 4294967266, %v624
    %v630 = vadd.s32 %v629, 127
    %v631 = vshll.u32 %v630, 23
    %v632 = vor.u32 4788187, %v631
    %v633 = vand.u32 2147483647, %v632
    %v635 = vcvt.s32.f32 %v628
    %v636 = vmul.f32 %v635, %v633
    %v637 = vxor.u32 %v636, 2147483648
    %v638 = vsel %vm555, %v637, %v636
    %v639 = vsub.s32 4, %v615
    %v640 = vsel %vm555, %v639, %v615
    %v641 = vsel %vm554, %v446, %v638
    %v642 = vsel %vm554, 0, %v640
    %v643 = vcosq.f32.pop %v641
    %v644 = vsinq.f32.pop %v641
    %vm645 = vweird.f32 %v446
    %v646 = vand.u32 %v642, 3
    %vm647 = vcmp.lt.s32.totalorder %v646, 2
    %vm648 = vcmp.eq.s32.totalorder %v646, 0
    %v649 = vxor.u32 %v644, 2147483648
    %v650 = vsel %vm648, %v643, %v649
    %vm651 = vcmp.eq.s32.totalorder %v646, 2
    %v652 = vxor.u32 %v643, 2147483648
    %v653 = vsel %vm651, %v652, %v644
    %v654 = vsel %vm647, %v650, %v653
    %v655 = vsel %vm645, nan, %v654
    %s656 = scalar_lea.vmem [#allocation5], 72
    %657 = vst [vmem:[%s656] sm:$0xff] %v655
    %s658 = scalar_lea.vmem [#allocation5], 32
    %659 = vst [vmem:[%s658] sm:$0xff] %v126
    %s660 = scalar_lea.vmem [#allocation5], 80
    %661 = vst [vmem:[%s660] sm:$0xff] %v231
    %v662 = vmul.f32 %v21, 0.5
    %v663 = vand.u32 2147483647, %v662
    %vm664 = vcmp.le.f32.partialorder %v663, 0.7853982
    %vm665 = vcmp.lt.s32.totalorder %v662, 0
    %v666 = vand.u32 %v662, 2139095040
    %v667 = vshrl.u32 %v666, 23
    %v668 = vsub.s32 %v667, 127
    %v669 = vand.u32 2147483647, %v662
    %v670 = vand.u32 %v669, 8388607
    %v671 = vor.u32 %v670, 8388608
    %v672 = vsub.s32 0, %v671
    %v673 = vadd.s32 %v668, 1
    %vm674 = vcmp.gt.s32.totalorder %v673, 0
    %v675 = vsel %vm674, %v673, 0
    %v676 = vshrl.u32 %v675, 5
    %v677 = vand.u32 %v675, 31
    %v678 = vsub.s32 32, %v677
    %v679 = vshrl.u32 683565275, %v678
    %v680 = vshll.u32 683565275, %v677
    %v681 = vshrl.u32 2475754826, %v678
    %v682 = vor.u32 %v680, %v681
    %v683 = vshll.u32 2475754826, %v677
    %v684 = vshrl.u32 2131351028, %v678
    %v685 = vor.u32 %v683, %v684
    %v686 = vshll.u32 2131351028, %v677
    %v687 = vshrl.u32 2102212464, %v678
    %v688 = vor.u32 %v686, %v687
    %v689 = vshll.u32 2102212464, %v677
    %v690 = vshrl.u32 920167782, %v678
    %v691 = vor.u32 %v689, %v690
    %v692 = vshll.u32 920167782, %v677
    %v693 = vshrl.u32 1326507024, %v678
    %v694 = vor.u32 %v692, %v693
    %vm695 = vcmp.lt.s32.totalorder %v676, 1
    %vm696 = vcmp.lt.s32.totalorder %v676, 2
    %vm697 = vcmp.lt.s32.totalorder %v676, 3
    %vm698 = vcmp.lt.s32.totalorder %v676, 4
    %v699 = vsel %vm695, %v679, %v682
    %v700 = vsel %vm698, %v688, 2102212464
    %v701 = vsel %vm697, %v685, %v700
    %v702 = vsel %vm696, %v699, %v701
    %v703 = vsel %vm695, %v682, %v685
    %v704 = vsel %vm698, %v691, 920167782
    %v705 = vsel %vm697, %v688, %v704
    %v706 = vsel %vm696, %v703, %v705
    %v707 = vsel %vm695, %v685, %v688
    %v708 = vsel %vm698, %v694, 1326507024
    %v709 = vsel %vm697, %v691, %v708
    %v710 = vsel %vm696, %v707, %v709
    %v711 = vshll.u32 %v671, 8
    %v712 = vmul.u32.u64.compose %v711, %v710
    %v713 = vextract.low.u32 %v712
    %v714 = vextract.high.u32 %v712
    %v715 = vmul.u32.u64.compose %v711, %v706
    %v716 = vextract.low.u32 %v715
    %v717 = vextract.high.u32 %v715
    %v718 = vmul.u32 %v711, %v702
    %v719 = vadd.s32 %v714, %v716
    %vm720 = vc.u32 %v714, %v716
    %v721 = vadd.s32 %v717, 1
    %v722 = vsel %vm720, %v721, %v717
    %v723 = vadd.s32 %v718, %v722
    %v724 = vadd.s32 %v723, 536870912
    %v725 = vshrl.u32 %v724, 30
    %v726 = vshll.u32 %v725, 30
    %v727 = vsub.s32 %v723, %v726
    %vm728 = vcmp.lt.s32.totalorder %v727, 0
    %v729 = vsub.s32 0, %v727
    %v730 = vsel %vm728, %v729, %v727
    %v731 = vclz %v730
    %v732 = vsub.s32 %v731, 2
    %vm733 = vcmp.gt.s32.totalorder 0, %v732
    %v734 = vsel %vm733, 0, %v732
    %v735 = vsub.s32 32, %v734
    %v736 = vshll.u32 %v727, %v734
    %v737 = vshrl.u32 %v719, %v735
    %v738 = vor.u32 %v736, %v737
    %v739 = vsub.s32 4294967266, %v734
    %v740 = vadd.s32 %v739, 127
    %v741 = vshll.u32 %v740, 23
    %v742 = vor.u32 4788187, %v741
    %v743 = vand.u32 2147483647, %v742
    %v745 = vcvt.s32.f32 %v738
    %v746 = vmul.f32 %v745, %v743
    %v747 = vxor.u32 %v746, 2147483648
    %v748 = vsel %vm665, %v747, %v746
    %v749 = vsub.s32 4, %v725
    %v750 = vsel %vm665, %v749, %v725
    %v751 = vsel %vm664, %v662, %v748
    %v752 = vsel %vm664, 0, %v750
    %v753 = vcosq.f32.pop %v751
    %v754 = vsinq.f32.pop %v751
    %vm755 = vweird.f32 %v662
    %v756 = vadd.s32 %v752, 3
    %v757 = vand.u32 %v756, 3
    %vm758 = vcmp.lt.s32.totalorder %v757, 2
    %vm759 = vcmp.eq.s32.totalorder %v757, 0
    %v760 = vxor.u32 %v754, 2147483648
    %v761 = vsel %vm759, %v753, %v760
    %vm762 = vcmp.eq.s32.totalorder %v757, 2
    %v763 = vxor.u32 %v753, 2147483648
    %v764 = vsel %vm762, %v763, %v754
    %v765 = vsel %vm758, %v761, %v764
    %v766 = vsel %vm755, nan, %v765
    %s767 = scalar_lea.vmem [#allocation5], 40
    %768 = vst [vmem:[%s767] sm:$0xff] %v766
    %v769 = vand.u32 2147483647, %v662
    %vm770 = vcmp.le.f32.partialorder %v769, 0.7853982
    %vm771 = vcmp.lt.s32.totalorder %v662, 0
    %v772 = vand.u32 %v662, 2139095040
    %v773 = vshrl.u32 %v772, 23
    %v774 = vsub.s32 %v773, 127
    %v775 = vand.u32 2147483647, %v662
    %v776 = vand.u32 %v775, 8388607
    %v777 = vor.u32 %v776, 8388608
    %v778 = vsub.s32 0, %v777
    %v779 = vadd.s32 %v774, 1
    %vm780 = vcmp.gt.s32.totalorder %v779, 0
    %v781 = vsel %vm780, %v779, 0
    %v782 = vshrl.u32 %v781, 5
    %v783 = vand.u32 %v781, 31
    %v784 = vsub.s32 32, %v783
    %v785 = vshrl.u32 683565275, %v784
    %v786 = vshll.u32 683565275, %v783
    %v787 = vshrl.u32 2475754826, %v784
    %v788 = vor.u32 %v786, %v787
    %v789 = vshll.u32 2475754826, %v783
    %v790 = vshrl.u32 2131351028, %v784
    %v791 = vor.u32 %v789, %v790
    %v792 = vshll.u32 2131351028, %v783
    %v793 = vshrl.u32 2102212464, %v784
    %v794 = vor.u32 %v792, %v793
    %v795 = vshll.u32 2102212464, %v783
    %v796 = vshrl.u32 920167782, %v784
    %v797 = vor.u32 %v795, %v796
    %v798 = vshll.u32 920167782, %v783
    %v799 = vshrl.u32 1326507024, %v784
    %v800 = vor.u32 %v798, %v799
    %vm801 = vcmp.lt.s32.totalorder %v782, 1
    %vm802 = vcmp.lt.s32.totalorder %v782, 2
    %vm803 = vcmp.lt.s32.totalorder %v782, 3
    %vm804 = vcmp.lt.s32.totalorder %v782, 4
    %v805 = vsel %vm801, %v785, %v788
    %v806 = vsel %vm804, %v794, 2102212464
    %v807 = vsel %vm803, %v791, %v806
    %v808 = vsel %vm802, %v805, %v807
    %v809 = vsel %vm801, %v788, %v791
    %v810 = vsel %vm804, %v797, 920167782
    %v811 = vsel %vm803, %v794, %v810
    %v812 = vsel %vm802, %v809, %v811
    %v813 = vsel %vm801, %v791, %v794
    %v814 = vsel %vm804, %v800, 1326507024
    %v815 = vsel %vm803, %v797, %v814
    %v816 = vsel %vm802, %v813, %v815
    %v817 = vshll.u32 %v777, 8
    %v818 = vmul.u32.u64.compose %v817, %v816
    %v819 = vextract.low.u32 %v818
    %v820 = vextract.high.u32 %v818
    %v821 = vmul.u32.u64.compose %v817, %v812
    %v822 = vextract.low.u32 %v821
    %v823 = vextract.high.u32 %v821
    %v824 = vmul.u32 %v817, %v808
    %v825 = vadd.s32 %v820, %v822
    %vm826 = vc.u32 %v820, %v822
    %v827 = vadd.s32 %v823, 1
    %v828 = vsel %vm826, %v827, %v823
    %v829 = vadd.s32 %v824, %v828
    %v830 = vadd.s32 %v829, 536870912
    %v831 = vshrl.u32 %v830, 30
    %v832 = vshll.u32 %v831, 30
    %v833 = vsub.s32 %v829, %v832
    %vm834 = vcmp.lt.s32.totalorder %v833, 0
    %v835 = vsub.s32 0, %v833
    %v836 = vsel %vm834, %v835, %v833
    %v837 = vclz %v836
    %v838 = vsub.s32 %v837, 2
    %vm839 = vcmp.gt.s32.totalorder 0, %v838
    %v840 = vsel %vm839, 0, %v838
    %v841 = vsub.s32 32, %v840
    %v842 = vshll.u32 %v833, %v840
    %v843 = vshrl.u32 %v825, %v841
    %v844 = vor.u32 %v842, %v843
    %v845 = vsub.s32 4294967266, %v840
    %v846 = vadd.s32 %v845, 127
    %v847 = vshll.u32 %v846, 23
    %v848 = vor.u32 4788187, %v847
    %v849 = vand.u32 2147483647, %v848
    %v851 = vcvt.s32.f32 %v844
    %v852 = vmul.f32 %v851, %v849
    %v853 = vxor.u32 %v852, 2147483648
    %v854 = vsel %vm771, %v853, %v852
    %v855 = vsub.s32 4, %v831
    %v856 = vsel %vm771, %v855, %v831
    %v857 = vsel %vm770, %v662, %v854
    %v858 = vsel %vm770, 0, %v856
    %v859 = vcosq.f32.pop %v857
    %v860 = vsinq.f32.pop %v857
    %vm861 = vweird.f32 %v662
    %v862 = vand.u32 %v858, 3
    %vm863 = vcmp.lt.s32.totalorder %v862, 2
    %vm864 = vcmp.eq.s32.totalorder %v862, 0
    %v865 = vxor.u32 %v860, 2147483648
    %v866 = vsel %vm864, %v859, %v865
    %vm867 = vcmp.eq.s32.totalorder %v862, 2
    %v868 = vxor.u32 %v859, 2147483648
    %v869 = vsel %vm867, %v868, %v860
    %v870 = vsel %vm863, %v866, %v869
    %v871 = vsel %vm861, nan, %v870
    %s872 = scalar_lea.vmem [#allocation5], 88
    %873 = vst [vmem:[%s872] sm:$0xff] %v871
    %v874 = vmul.f32 %v21, 0.33333334
    %v875 = vand.u32 2147483647, %v874
    %vm876 = vcmp.le.f32.partialorder %v875, 0.7853982
    %vm877 = vcmp.lt.s32.totalorder %v874, 0
    %v878 = vand.u32 %v874, 2139095040
    %v879 = vshrl.u32 %v878, 23
    %v880 = vsub.s32 %v879, 127
    %v881 = vand.u32 2147483647, %v874
    %v882 = vand.u32 %v881, 8388607
    %v883 = vor.u32 %v882, 8388608
    %v884 = vsub.s32 0, %v883
    %v885 = vadd.s32 %v880, 1
    %vm886 = vcmp.gt.s32.totalorder %v885, 0
    %v887 = vsel %vm886, %v885, 0
    %v888 = vshrl.u32 %v887, 5
    %v889 = vand.u32 %v887, 31
    %v890 = vsub.s32 32, %v889
    %v891 = vshrl.u32 683565275, %v890
    %v892 = vshll.u32 683565275, %v889
    %v893 = vshrl.u32 2475754826, %v890
    %v894 = vor.u32 %v892, %v893
    %v895 = vshll.u32 2475754826, %v889
    %v896 = vshrl.u32 2131351028, %v890
    %v897 = vor.u32 %v895, %v896
    %v898 = vshll.u32 2131351028, %v889
    %v899 = vshrl.u32 2102212464, %v890
    %v900 = vor.u32 %v898, %v899
    %v901 = vshll.u32 2102212464, %v889
    %v902 = vshrl.u32 920167782, %v890
    %v903 = vor.u32 %v901, %v902
    %v904 = vshll.u32 920167782, %v889
    %v905 = vshrl.u32 1326507024, %v890
    %v906 = vor.u32 %v904, %v905
    %vm907 = vcmp.lt.s32.totalorder %v888, 1
    %vm908 = vcmp.lt.s32.totalorder %v888, 2
    %vm909 = vcmp.lt.s32.totalorder %v888, 3
    %vm910 = vcmp.lt.s32.totalorder %v888, 4
    %v911 = vsel %vm907, %v891, %v894
    %v912 = vsel %vm910, %v900, 2102212464
    %v913 = vsel %vm909, %v897, %v912
    %v914 = vsel %vm908, %v911, %v913
    %v915 = vsel %vm907, %v894, %v897
    %v916 = vsel %vm910, %v903, 920167782
    %v917 = vsel %vm909, %v900, %v916
    %v918 = vsel %vm908, %v915, %v917
    %v919 = vsel %vm907, %v897, %v900
    %v920 = vsel %vm910, %v906, 1326507024
    %v921 = vsel %vm909, %v903, %v920
    %v922 = vsel %vm908, %v919, %v921
    %v923 = vshll.u32 %v883, 8
    %v924 = vmul.u32.u64.compose %v923, %v922
    %v925 = vextract.low.u32 %v924
    %v926 = vextract.high.u32 %v924
    %v927 = vmul.u32.u64.compose %v923, %v918
    %v928 = vextract.low.u32 %v927
    %v929 = vextract.high.u32 %v927
    %v930 = vmul.u32 %v923, %v914
    %v931 = vadd.s32 %v926, %v928
    %vm932 = vc.u32 %v926, %v928
    %v933 = vadd.s32 %v929, 1
    %v934 = vsel %vm932, %v933, %v929
    %v935 = vadd.s32 %v930, %v934
    %v936 = vadd.s32 %v935, 536870912
    %v937 = vshrl.u32 %v936, 30
    %v938 = vshll.u32 %v937, 30
    %v939 = vsub.s32 %v935, %v938
    %vm940 = vcmp.lt.s32.totalorder %v939, 0
    %v941 = vsub.s32 0, %v939
    %v942 = vsel %vm940, %v941, %v939
    %v943 = vclz %v942
    %v944 = vsub.s32 %v943, 2
    %vm945 = vcmp.gt.s32.totalorder 0, %v944
    %v946 = vsel %vm945, 0, %v944
    %v947 = vsub.s32 32, %v946
    %v948 = vshll.u32 %v939, %v946
    %v949 = vshrl.u32 %v931, %v947
    %v950 = vor.u32 %v948, %v949
    %v951 = vsub.s32 4294967266, %v946
    %v952 = vadd.s32 %v951, 127
    %v953 = vshll.u32 %v952, 23
    %v954 = vor.u32 4788187, %v953
    %v955 = vand.u32 2147483647, %v954
    %v957 = vcvt.s32.f32 %v950
    %v958 = vmul.f32 %v957, %v955
    %v959 = vxor.u32 %v958, 2147483648
    %v960 = vsel %vm877, %v959, %v958
    %v961 = vsub.s32 4, %v937
    %v962 = vsel %vm877, %v961, %v937
    %v963 = vsel %vm876, %v874, %v960
    %v964 = vsel %vm876, 0, %v962
    %v965 = vcosq.f32.pop %v963
    %v966 = vsinq.f32.pop %v963
    %vm967 = vweird.f32 %v874
    %v968 = vadd.s32 %v964, 3
    %v969 = vand.u32 %v968, 3
    %vm970 = vcmp.lt.s32.totalorder %v969, 2
    %vm971 = vcmp.eq.s32.totalorder %v969, 0
    %v972 = vxor.u32 %v966, 2147483648
    %v973 = vsel %vm971, %v965, %v972
    %vm974 = vcmp.eq.s32.totalorder %v969, 2
    %v975 = vxor.u32 %v965, 2147483648
    %v976 = vsel %vm974, %v975, %v966
    %v977 = vsel %vm970, %v973, %v976
    %v978 = vsel %vm967, nan, %v977
    %s979 = scalar_lea.vmem [#allocation5], 48
    %980 = vst [vmem:[%s979] sm:$0xff] %v978
    %v981 = vand.u32 2147483647, %v874
    %vm982 = vcmp.le.f32.partialorder %v981, 0.7853982
    %vm983 = vcmp.lt.s32.totalorder %v874, 0
    %v984 = vand.u32 %v874, 2139095040
    %v985 = vshrl.u32 %v984, 23
    %v986 = vsub.s32 %v985, 127
    %v987 = vand.u32 2147483647, %v874
    %v988 = vand.u32 %v987, 8388607
    %v989 = vor.u32 %v988, 8388608
    %v990 = vsub.s32 0, %v989
    %v991 = vadd.s32 %v986, 1
    %vm992 = vcmp.gt.s32.totalorder %v991, 0
    %v993 = vsel %vm992, %v991, 0
    %v994 = vshrl.u32 %v993, 5
    %v995 = vand.u32 %v993, 31
    %v996 = vsub.s32 32, %v995
    %v997 = vshrl.u32 683565275, %v996
    %v998 = vshll.u32 683565275, %v995
    %v999 = vshrl.u32 2475754826, %v996
    %v1000 = vor.u32 %v998, %v999
    %v1001 = vshll.u32 2475754826, %v995
    %v1002 = vshrl.u32 2131351028, %v996
    %v1003 = vor.u32 %v1001, %v1002
    %v1004 = vshll.u32 2131351028, %v995
    %v1005 = vshrl.u32 2102212464, %v996
    %v1006 = vor.u32 %v1004, %v1005
    %v1007 = vshll.u32 2102212464, %v995
    %v1008 = vshrl.u32 920167782, %v996
    %v1009 = vor.u32 %v1007, %v1008
    %v1010 = vshll.u32 920167782, %v995
    %v1011 = vshrl.u32 1326507024, %v996
    %v1012 = vor.u32 %v1010, %v1011
    %vm1013 = vcmp.lt.s32.totalorder %v994, 1
    %vm1014 = vcmp.lt.s32.totalorder %v994, 2
    %vm1015 = vcmp.lt.s32.totalorder %v994, 3
    %vm1016 = vcmp.lt.s32.totalorder %v994, 4
    %v1017 = vsel %vm1013, %v997, %v1000
    %v1018 = vsel %vm1016, %v1006, 2102212464
    %v1019 = vsel %vm1015, %v1003, %v1018
    %v1020 = vsel %vm1014, %v1017, %v1019
    %v1021 = vsel %vm1013, %v1000, %v1003
    %v1022 = vsel %vm1016, %v1009, 920167782
    %v1023 = vsel %vm1015, %v1006, %v1022
    %v1024 = vsel %vm1014, %v1021, %v1023
    %v1025 = vsel %vm1013, %v1003, %v1006
    %v1026 = vsel %vm1016, %v1012, 1326507024
    %v1027 = vsel %vm1015, %v1009, %v1026
    %v1028 = vsel %vm1014, %v1025, %v1027
    %v1029 = vshll.u32 %v989, 8
    %v1030 = vmul.u32.u64.compose %v1029, %v1028
    %v1031 = vextract.low.u32 %v1030
    %v1032 = vextract.high.u32 %v1030
    %v1033 = vmul.u32.u64.compose %v1029, %v1024
    %v1034 = vextract.low.u32 %v1033
    %v1035 = vextract.high.u32 %v1033
    %v1036 = vmul.u32 %v1029, %v1020
    %v1037 = vadd.s32 %v1032, %v1034
    %vm1038 = vc.u32 %v1032, %v1034
    %v1039 = vadd.s32 %v1035, 1
    %v1040 = vsel %vm1038, %v1039, %v1035
    %v1041 = vadd.s32 %v1036, %v1040
    %v1042 = vadd.s32 %v1041, 536870912
    %v1043 = vshrl.u32 %v1042, 30
    %v1044 = vshll.u32 %v1043, 30
    %v1045 = vsub.s32 %v1041, %v1044
    %vm1046 = vcmp.lt.s32.totalorder %v1045, 0
    %v1047 = vsub.s32 0, %v1045
    %v1048 = vsel %vm1046, %v1047, %v1045
    %v1049 = vclz %v1048
    %v1050 = vsub.s32 %v1049, 2
    %vm1051 = vcmp.gt.s32.totalorder 0, %v1050
    %v1052 = vsel %vm1051, 0, %v1050
    %v1053 = vsub.s32 32, %v1052
    %v1054 = vshll.u32 %v1045, %v1052
    %v1055 = vshrl.u32 %v1037, %v1053
    %v1056 = vor.u32 %v1054, %v1055
    %v1057 = vsub.s32 4294967266, %v1052
    %v1058 = vadd.s32 %v1057, 127
    %v1059 = vshll.u32 %v1058, 23
    %v1060 = vor.u32 4788187, %v1059
    %v1061 = vand.u32 2147483647, %v1060
    %v1063 = vcvt.s32.f32 %v1056
    %v1064 = vmul.f32 %v1063, %v1061
    %v1065 = vxor.u32 %v1064, 2147483648
    %v1066 = vsel %vm983, %v1065, %v1064
    %v1067 = vsub.s32 4, %v1043
    %v1068 = vsel %vm983, %v1067, %v1043
    %v1069 = vsel %vm982, %v874, %v1066
    %v1070 = vsel %vm982, 0, %v1068
    %v1071 = vcosq.f32.pop %v1069
    %v1072 = vsinq.f32.pop %v1069
    %vm1073 = vweird.f32 %v874
    %v1074 = vand.u32 %v1070, 3
    %vm1075 = vcmp.lt.s32.totalorder %v1074, 2
    %vm1076 = vcmp.eq.s32.totalorder %v1074, 0
    %v1077 = vxor.u32 %v1072, 2147483648
    %v1078 = vsel %vm1076, %v1071, %v1077
    %vm1079 = vcmp.eq.s32.totalorder %v1074, 2
    %v1080 = vxor.u32 %v1071, 2147483648
    %v1081 = vsel %vm1079, %v1080, %v1072
    %v1082 = vsel %vm1075, %v1078, %v1081
    %v1083 = vsel %vm1073, nan, %v1082
    %s1084 = scalar_lea.vmem [#allocation5], 96
    %1085 = vst [vmem:[%s1084] sm:$0xff] %v1083
    // Predicated region
    $region10: #{tpu_custom_call.1} parent=1 // pred_check
      _
    $region11: #{tpu_custom_call.1} parent=1 // pred_check_branch
      %1087 = sbr.rel (0) target = $region13
    $region12: #{tpu_custom_call.1} parent=1 // pred_region
      %s1089 = ssub.s32 1664, 1664
      %1090 = vsyncadd [#allocation4], %s1089
      %s1091 = sshll.u32 [#allocation5], 4
      %s1092 = int_to_ptr.vmem [resolvable:$true] %s1091
      %1097 = dma.vmem_to_hbm [thread:$0]  %s1092, 1664, %s1, [#allocation4], 128, 128, 8
    $region13: #{tpu_custom_call.1} parent=1 // pred_fallthru
      _
    // Predicated region
    $region14: #{tpu_custom_call.1} parent=1 // pred_check
      _
    $region15: #{tpu_custom_call.1} parent=1 // pred_check_branch
      %1099 = sbr.rel (0) target = $region17
    $region16: #{tpu_custom_call.1} parent=1 // pred_region
      %1100 = dma.done [#allocation4], 1664
    $region17: #{tpu_custom_call.1} parent=1 // pred_fallthru
      _
    %1101 = vsyncpa [#allocation3], 1
    %1102 = vsyncpa [#allocation4], 1

</llo_original>
